<compile_context>
chip_gen: v7x
topology: tpu7x:2x2x1
jax: 0.10.0
libtpu: 0.0.40
codegen_flags: <defaults>
</compile_context>

<pallas_src>
import jax
import jax.numpy as jnp
from jax.experimental import pallas as pl
from jax.experimental.pallas import tpu as pltpu


GROUP = 8  # batch rows packed per lane-dense row (8*in=128 lanes; 8x MXU redundancy)


def _disc1d_packed_kernel(xg_ref, w1p_ref, b1p_ref, w2p_ref, b2p_ref, og_ref):
    # xg_ref: [tbg, GROUP*in] — lane-dense; each row packs GROUP batch rows.
    # Packed weights are block-diagonal, so these are exactly GROUP independent
    # copies of the original Linear layers (f32 MXU accumulation, tanh on EUP).
    h = jnp.tanh(
        jnp.dot(xg_ref[...], w1p_ref[...], preferred_element_type=jnp.float32)
        + b1p_ref[...]
    )
    y = jnp.dot(h, w2p_ref[...], preferred_element_type=jnp.float32) + b2p_ref[...]
    og_ref[...] = y.astype(og_ref.dtype)


def _pack_params(params, group, dtype):
    """Block-diagonal packed weights kron(I_G, W.T) and tiled biases.

    Tiny (a few hundred KiB); callers doing repeated inference can hoist this.
    """
    eye = jnp.eye(group, dtype=dtype)
    w1p = jnp.kron(eye, params["w1"].T.astype(dtype))         # [G*in,  G*mid]
    w2p = jnp.kron(eye, params["w2"].T.astype(dtype))         # [G*mid, G*out]
    b1p = jnp.tile(params["b1"].astype(dtype), group)[None]   # [1, G*mid]
    b2p = jnp.tile(params["b2"].astype(dtype), group)[None]   # [1, G*out]
    return w1p, b1p, w2p, b2p


def _forward_xla(x, params):
    """Plain fused-XLA path (reference + small-batch fallback)."""
    h = jnp.tanh(x @ params["w1"].T + params["b1"])
    return h @ params["w2"].T + params["b2"]


def _vmem_limit_bytes(tbg, gin, gmid, gout):
    """Explicit VMEM budget: x/out double-buffered + [tbg, G*mid] intermediates."""
    pad128 = lambda n: ((n + 127) // 128) * 128
    stream = 4 * tbg * (2 * pad128(gin) + 2 * pad128(gout) + 2 * pad128(gmid))
    est = int(stream * 1.5) + (4 << 20)          # 50% headroom + weights/misc
    return max(32 << 20, min(est, 100 << 20))


def discriminator1d_forward(x, params, *, batch_tile=65536, min_kernel_batch=2048):
    """x: [B, in_size] float32.

    params use PyTorch nn.Linear layout:
      w1 [mid, in], b1 [mid], w2 [out, mid], b2 [out].
    Returns [B, out_size].
    """
    B, in_size = x.shape
    mid_size = params["w1"].shape[0]
    out_size = params["w2"].shape[0]

    # Microsecond-scale work or awkward batch: one fused XLA matmul chain beats
    # a kernel launch + packing.
    if B < max(min_kernel_batch, GROUP) or B % GROUP != 0:
        return _forward_xla(x, params)

    g = GROUP
    gin, gmid, gout = g * in_size, g * mid_size, g * out_size
    Bg = B // g

    # Free row-major reshape (bitcast, no HBM pass): [B, in] -> [Bg, g*in].
    xg = x.reshape(Bg, gin)
    w1p, b1p, w2p, b2p = _pack_params(params, g, x.dtype)

    # Packed-row tile: as large as the v7x VMEM budget allows so per-step HBM
    # traffic dwarfs the fixed grid-step overhead.  Sublane dim must be a
    # multiple of 8 or the full extent.
    tbg_req = max(1, batch_tile // g)
    if Bg <= tbg_req:
        tbg = Bg                                  # single resident block
    else:
        tbg = max(8, (tbg_req // 8) * 8)
    grid = (pl.cdiv(Bg, tbg),)

    const = lambda i: (0, 0)   # weights/biases: one block, resident across steps
    # NOTE: weight/bias specs could use pipeline_mode=pl.Buffered(1); they are
    # only a few hundred KiB so the saving is negligible and omitted.

    out_g = pl.pallas_call(
        _disc1d_packed_kernel,
        out_shape=jax.ShapeDtypeStruct((Bg, gout), x.dtype),
        grid_spec=pltpu.PrefetchScalarGridSpec(
            num_scalar_prefetch=0,
            grid=grid,
            in_specs=[
                pl.BlockSpec((tbg, gin), lambda i: (i, 0)),   # packed x tile
                pl.BlockSpec((gin, gmid), const),             # kron(I, w1.T)
                pl.BlockSpec((1, gmid), const),               # packed b1
                pl.BlockSpec((gmid, gout), const),            # kron(I, w2.T)
                pl.BlockSpec((1, gout), const),               # packed b2
            ],
            out_specs=pl.BlockSpec((tbg, gout), lambda i: (i, 0)),
        ),
        compiler_params=pltpu.CompilerParams(
            dimension_semantics=("parallel",),   # batch tiles shard across TCs on v7x
            vmem_limit_bytes=_vmem_limit_bytes(tbg, gin, gmid, gout),
        ),
    )(xg, w1p, b1p, w2p, b2p)

    # Free reshape back to native [B, out_size] layout.
    return out_g.reshape(B, out_size)


def init_discriminator1d_params(key, in_size, mid_size, out_size, dtype=jnp.float32):
    """nn.Linear default init U(-1/sqrt(fan_in), 1/sqrt(fan_in)), PyTorch layout."""
    ks = jax.random.split(key, 4)

    def linear(kw, kb, fan_in, fan_out):
        bound = 1.0 / (fan_in ** 0.5)
        w = jax.random.uniform(kw, (fan_out, fan_in), dtype, -bound, bound)
        b = jax.random.uniform(kb, (fan_out,), dtype, -bound, bound)
        return w, b

    w1, b1 = linear(ks[0], ks[1], in_size, mid_size)
    w2, b2 = linear(ks[2], ks[3], mid_size, out_size)
    return {"w1": w1, "b1": b1, "w2": w2, "b2": b2}


if __name__ == "__main__":
    in_size, mid_size, out_size = 16, 32, 8
    batch = 256

    key = jax.random.PRNGKey(0)
    k_x, k_p = jax.random.split(key)
    x = jax.random.normal(k_x, (batch, in_size), dtype=jnp.float32)
    params = init_discriminator1d_params(k_p, in_size, mid_size, out_size)

    # Force the Pallas path at this small test batch; batch_tile=128 gives a
    # multi-step parallel grid (tbg=16 packed rows, grid=(2,)) so pipelining,
    # ragged-free tiling and the packed-weight math are all exercised.
    out = discriminator1d_forward(x, params, batch_tile=128, min_kernel_batch=0)
    out = jax.block_until_ready(out)

    ref = _forward_xla(x, params)
    assert out.shape == (batch, out_size)
    assert jnp.allclose(out, ref, atol=1e-4, rtol=1e-4), "mismatch vs JAX reference"

    print("KERNEL_OK")
</pallas_src>

<mosaic_0001>
module attributes {stable_mosaic.version = 11 : i64} {
  func.func @_disc1d_packed_kernel(%arg0: i32, %arg1: memref<16x128xf32, #tpu.memory_space<vmem>>, %arg2: memref<128x256xf32, #tpu.memory_space<vmem>>, %arg3: memref<1x256xf32, #tpu.memory_space<vmem>>, %arg4: memref<256x64xf32, #tpu.memory_space<vmem>>, %arg5: memref<1x64xf32, #tpu.memory_space<vmem>>, %arg6: memref<16x64xf32, #tpu.memory_space<vmem>>) attributes {dimension_semantics = [#tpu.dimension_semantics<parallel>], iteration_bounds = array<i64: 2>, scalar_prefetch = 0 : i64, scratch_operands = 0 : i64, tpu.core_type = #tpu.core_type<tc>, window_params = [{transform_indices = @transform_0, window_bounds = array<i64: 16, 128>}, {pipeline_mode = #tpu.pipeline_mode<synchronous>, transform_indices = @transform_1, window_bounds = array<i64: 128, 256>}, {pipeline_mode = #tpu.pipeline_mode<synchronous>, transform_indices = @transform_2, window_bounds = array<i64: 1, 256>}, {pipeline_mode = #tpu.pipeline_mode<synchronous>, transform_indices = @transform_3, window_bounds = array<i64: 256, 64>}, {pipeline_mode = #tpu.pipeline_mode<synchronous>, transform_indices = @transform_4, window_bounds = array<i64: 1, 64>}, {transform_indices = @transform_5, window_bounds = array<i64: 16, 64>}]} {
    %c0 = arith.constant 0 : index
    %c0_0 = arith.constant 0 : index
    %0 = vector.load %arg1[%c0, %c0_0] : memref<16x128xf32, #tpu.memory_space<vmem>>, vector<16x128xf32>
    %c0_1 = arith.constant 0 : index
    %c0_2 = arith.constant 0 : index
    %1 = vector.load %arg2[%c0_1, %c0_2] : memref<128x256xf32, #tpu.memory_space<vmem>>, vector<128x256xf32>
    %cst = arith.constant dense<0.000000e+00> : vector<16x256xf32>
    %2 = tpu.matmul %0, %1, %cst {dimension_numbers = #tpu.dot_dimension_numbers<[1], [0], [0], [1], [0, 0, 1, 1], [], []>} : vector<16x128xf32>, vector<128x256xf32>, vector<16x256xf32> -> vector<16x256xf32>
    %c0_3 = arith.constant 0 : index
    %c0_4 = arith.constant 0 : index
    %3 = vector.load %arg3[%c0_3, %c0_4] : memref<1x256xf32, #tpu.memory_space<vmem>>, vector<1x256xf32>
    %4 = vector.broadcast %3 : vector<1x256xf32> to vector<16x256xf32>
    %5 = arith.addf %2, %4 : vector<16x256xf32>
    %6 = math.tanh %5 : vector<16x256xf32>
    %c0_5 = arith.constant 0 : index
    %c0_6 = arith.constant 0 : index
    %7 = vector.load %arg4[%c0_5, %c0_6] : memref<256x64xf32, #tpu.memory_space<vmem>>, vector<256x64xf32>
    %cst_7 = arith.constant dense<0.000000e+00> : vector<16x64xf32>
    %8 = tpu.matmul %6, %7, %cst_7 {dimension_numbers = #tpu.dot_dimension_numbers<[1], [0], [0], [1], [0, 0, 1, 1], [], []>} : vector<16x256xf32>, vector<256x64xf32>, vector<16x64xf32> -> vector<16x64xf32>
    %c0_8 = arith.constant 0 : index
    %c0_9 = arith.constant 0 : index
    %9 = vector.load %arg5[%c0_8, %c0_9] : memref<1x64xf32, #tpu.memory_space<vmem>>, vector<1x64xf32>
    %10 = vector.broadcast %9 : vector<1x64xf32> to vector<16x64xf32>
    %11 = arith.addf %8, %10 : vector<16x64xf32>
    %c0_10 = arith.constant 0 : index
    %c0_11 = arith.constant 0 : index
    %12 = vector.load %arg6[%c0_10, %c0_11] : memref<16x64xf32, #tpu.memory_space<vmem>>, vector<16x64xf32>
    tpu.vector_store %arg6[%c0_10, %c0_11], %11 {strides = array<i32>} : memref<16x64xf32, #tpu.memory_space<vmem>>, vector<16x64xf32>,
    return
  }
  func.func @transform_0(%arg0: i32) -> (i32, i32) {
    %c0_i32 = arith.constant 0 : i32
    %c0_i32_0 = arith.constant 0 : i32
    return %arg0, %c0_i32 : i32, i32
  }
  func.func @transform_1(%arg0: i32) -> (i32, i32) {
    %c0_i32 = arith.constant 0 : i32
    %c0_i32_0 = arith.constant 0 : i32
    %c0_i32_1 = arith.constant 0 : i32
    return %c0_i32, %c0_i32_0 : i32, i32
  }
  func.func @transform_2(%arg0: i32) -> (i32, i32) {
    %c0_i32 = arith.constant 0 : i32
    %c0_i32_0 = arith.constant 0 : i32
    %c0_i32_1 = arith.constant 0 : i32
    return %c0_i32, %c0_i32_0 : i32, i32
  }
  func.func @transform_3(%arg0: i32) -> (i32, i32) {
    %c0_i32 = arith.constant 0 : i32
    %c0_i32_0 = arith.constant 0 : i32
    %c0_i32_1 = arith.constant 0 : i32
    return %c0_i32, %c0_i32_0 : i32, i32
  }
  func.func @transform_4(%arg0: i32) -> (i32, i32) {
    %c0_i32 = arith.constant 0 : i32
    %c0_i32_0 = arith.constant 0 : i32
    %c0_i32_1 = arith.constant 0 : i32
    return %c0_i32, %c0_i32_0 : i32, i32
  }
  func.func @transform_5(%arg0: i32) -> (i32, i32) {
    %c0_i32 = arith.constant 0 : i32
    %c0_i32_0 = arith.constant 0 : i32
    return %arg0, %c0_i32 : i32, i32
  }
}

</mosaic_0001>

<llo_original>
// kernel: tpu_custom_call.1
$region0: #{tpu_custom_call.1}
  #allocation0 [shape = 'u32[]', space=smem, size = 0x4, offset = 0x4, fixed_abs, tag = 'smem constant byte address 0x4 - core index']
  #allocation1 [shape = 'u32[144,128]{1,0:T(1,128)}', space=vmem, size = 0x12000, scoped, tag = 'internal scratch']
  %s0 = inlined_call_operand.vmem [shape: f32[32,128], index: 0, kind: input, shape index: {}]
  %s1 = inlined_call_operand.vmem [shape: f32[128,256], index: 1, kind: input, shape index: {}]
  %s2 = inlined_call_operand.vmem [shape: f32[1,256], index: 2, kind: input, shape index: {}]
  %s3 = inlined_call_operand.vmem [shape: f32[256,64], index: 3, kind: input, shape index: {}]
  %s4 = inlined_call_operand.vmem [shape: f32[1,64], index: 4, kind: input, shape index: {}]
  %s5 = inlined_call_operand.hbm [shape: f32[32,64], index: 5, kind: output, shape index: {}]
  %s6 = sld [smem:[#allocation0]]
  $region53: #{tpu_custom_call.1} parent=0
    _
  %s8 = ssub.s32 1, %s6
  %s9 = scalar_select 0, %s8, %s6
  $region1: #{tpu_custom_call.1} parent=0
    #allocation2 [shape = 'u8[16384]{0}', space=vmem, size = 0x4000, scoped, tag = 'output window, operand 0']
    #allocation3 [shape = 's32[2]{0}', space=sflag, size = 0x8, scoped, tag = 'scoped memory for tpu_custom_call.1']
    %10 = vsyncpa [#allocation3], 0
    %s11 = scalar_lea.sflag [#allocation3], 1
    %12 = vsyncpa %s11, 0
    loop: start=0, step=1, limit=4
    $region2: #{tpu_custom_call.1} parent=1 // loop_pre_header
      _
    $region3: #{tpu_custom_call.1} parent=1 // loop_header
      %s14 = sphi 0, %s18
      %p15 = scmp.ge.s32.totalorder %s14, 4
      %s24 = sphi 0, %s26
      %s27 = sphi 0, %s24
      %s28 = sphi 0, %s27
      %s44 = sphi 0, %s28
      %s48 = sphi 0, %s48
      %s50 = sphi 0, %s48
      %s51 = sphi 0, %s50
      %s65 = sphi 0, %s51
      %s69 = sphi 0, %s69
      %s71 = sphi 0, %s69
      %s72 = sphi 0, %s71
      %s86 = sphi 0, %s72
      %s90 = sphi 0, %s90
      %s92 = sphi 0, %s90
      %s93 = sphi 0, %s92
      %s107 = sphi 0, %s93
      %s111 = sphi 0, %s111
      %s113 = sphi 0, %s111
      %s114 = sphi 0, %s113
      %s128 = sphi 0, %s114
      %s134 = sphi 0, %s136
      %s137 = sphi 0, %s134
      %s138 = sphi 0, %s137
      %s154 = sphi 0, %s138
    $region4: #{tpu_custom_call.1} parent=1 // loop_header_branch
      %17 = sbr.rel (%p15) target = $region8
    $region5: #{tpu_custom_call.1} parent=1 // loop_body
      %s19 = ssub.s32 %s14, 1
      %s20 = ssub.s32 %s14, 2
      %s21 = sadd.s32 %s14, 1
      %s22 = ssub.s32 %s14, %s21
      %p23 = scmp.eq.s32.totalorder %s22, 0
      %s25 = sadd.s32 %s24, 1
      %s26 = scalar_select %p23, %s24, %s25
      %p29 = pneg %p23
      %p30 = scmp.eq.s32.totalorder %s14, 1
      %p31 = por %p29, %p30
      %p32 = scmp.ne.s32.totalorder %s24, %s27
      %p33 = scmp.eq.s32.totalorder %s14, 0
      %p34 = por %p32, %p33
      %p35 = scmp.ne.s32.totalorder %s24, %s27
      %p36 = scmp.eq.s32.totalorder %s19, 1
      %p37 = por %p35, %p36
      %p38 = scmp.ne.s32.totalorder %s27, %s28
      %p39 = scmp.eq.s32.totalorder %s19, 0
      %p40 = por %p38, %p39
      %p41 = scmp.ne.s32.totalorder %s27, %s28
      %p42 = scmp.eq.s32.totalorder %s20, 1
      %p43 = por %p41, %p42
      %p45 = scmp.ne.s32.totalorder %s28, %s44
      %p46 = scmp.eq.s32.totalorder %s20, 0
      %p47 = por %p45, %p46
      %s49 = sadd.s32 %s48, 1
      %p52 = scmp.eq.s32.totalorder %s14, 1
      %p53 = scmp.ne.s32.totalorder %s48, %s50
      %p54 = scmp.eq.s32.totalorder %s14, 0
      %p55 = por %p53, %p54
      %p56 = scmp.ne.s32.totalorder %s48, %s50
      %p57 = scmp.eq.s32.totalorder %s19, 1
      %p58 = por %p56, %p57
      %p59 = scmp.ne.s32.totalorder %s50, %s51
      %p60 = scmp.eq.s32.totalorder %s19, 0
      %p61 = por %p59, %p60
      %p62 = scmp.ne.s32.totalorder %s50, %s51
      %p63 = scmp.eq.s32.totalorder %s20, 1
      %p64 = por %p62, %p63
      %p66 = scmp.ne.s32.totalorder %s51, %s65
      %p67 = scmp.eq.s32.totalorder %s20, 0
      %p68 = por %p66, %p67
      %s70 = sadd.s32 %s69, 1
      %p73 = scmp.eq.s32.totalorder %s14, 1
      %p74 = scmp.ne.s32.totalorder %s69, %s71
      %p75 = scmp.eq.s32.totalorder %s14, 0
      %p76 = por %p74, %p75
      %p77 = scmp.ne.s32.totalorder %s69, %s71
      %p78 = scmp.eq.s32.totalorder %s19, 1
      %p79 = por %p77, %p78
      %p80 = scmp.ne.s32.totalorder %s71, %s72
      %p81 = scmp.eq.s32.totalorder %s19, 0
      %p82 = por %p80, %p81
      %p83 = scmp.ne.s32.totalorder %s71, %s72
      %p84 = scmp.eq.s32.totalorder %s20, 1
      %p85 = por %p83, %p84
      %p87 = scmp.ne.s32.totalorder %s72, %s86
      %p88 = scmp.eq.s32.totalorder %s20, 0
      %p89 = por %p87, %p88
      %s91 = sadd.s32 %s90, 1
      %p94 = scmp.eq.s32.totalorder %s14, 1
      %p95 = scmp.ne.s32.totalorder %s90, %s92
      %p96 = scmp.eq.s32.totalorder %s14, 0
      %p97 = por %p95, %p96
      %p98 = scmp.ne.s32.totalorder %s90, %s92
      %p99 = scmp.eq.s32.totalorder %s19, 1
      %p100 = por %p98, %p99
      %p101 = scmp.ne.s32.totalorder %s92, %s93
      %p102 = scmp.eq.s32.totalorder %s19, 0
      %p103 = por %p101, %p102
      %p104 = scmp.ne.s32.totalorder %s92, %s93
      %p105 = scmp.eq.s32.totalorder %s20, 1
      %p106 = por %p104, %p105
      %p108 = scmp.ne.s32.totalorder %s93, %s107
      %p109 = scmp.eq.s32.totalorder %s20, 0
      %p110 = por %p108, %p109
      %s112 = sadd.s32 %s111, 1
      %p115 = scmp.eq.s32.totalorder %s14, 1
      %p116 = scmp.ne.s32.totalorder %s111, %s113
      %p117 = scmp.eq.s32.totalorder %s14, 0
      %p118 = por %p116, %p117
      %p119 = scmp.ne.s32.totalorder %s111, %s113
      %p120 = scmp.eq.s32.totalorder %s19, 1
      %p121 = por %p119, %p120
      %p122 = scmp.ne.s32.totalorder %s113, %s114
      %p123 = scmp.eq.s32.totalorder %s19, 0
      %p124 = por %p122, %p123
      %p125 = scmp.ne.s32.totalorder %s113, %s114
      %p126 = scmp.eq.s32.totalorder %s20, 1
      %p127 = por %p125, %p126
      %p129 = scmp.ne.s32.totalorder %s114, %s128
      %p130 = scmp.eq.s32.totalorder %s20, 0
      %p131 = por %p129, %p130
      %s132 = ssub.s32 %s14, %s21
      %p133 = scmp.eq.s32.totalorder %s132, 0
      %s135 = sadd.s32 %s134, 1
      %s136 = scalar_select %p133, %s134, %s135
      %p139 = pneg %p133
      %p140 = scmp.eq.s32.totalorder %s14, 1
      %p141 = por %p139, %p140
      %p142 = scmp.ne.s32.totalorder %s134, %s137
      %p143 = scmp.eq.s32.totalorder %s14, 0
      %p144 = por %p142, %p143
      %p145 = scmp.ne.s32.totalorder %s134, %s137
      %p146 = scmp.eq.s32.totalorder %s19, 1
      %p147 = por %p145, %p146
      %p148 = scmp.ne.s32.totalorder %s137, %s138
      %p149 = scmp.eq.s32.totalorder %s19, 0
      %p150 = por %p148, %p149
      %p151 = scmp.ne.s32.totalorder %s137, %s138
      %p152 = scmp.eq.s32.totalorder %s20, 1
      %p153 = por %p151, %p152
      %p155 = scmp.ne.s32.totalorder %s138, %s154
      %p156 = scmp.eq.s32.totalorder %s20, 0
      %p157 = por %p155, %p156
      %p158 = scmp.le.s32.totalorder 1, %s14
      %p159 = scmp.lt.s32.totalorder %s14, 3
      %p160 = pnand %p158, %p159
      %p161 = pneg %p160
      // Predicated region
      $region9: #{tpu_custom_call.1} parent=5 // pred_check
        _
      $region10: #{tpu_custom_call.1} parent=5 // pred_check_branch
        %163 = sbr.rel (%p160) target = $region12
      $region11: #{tpu_custom_call.1} parent=5 // pred_region
        %s164 = ssub.s32 %s14, 1
        // Predicated region
        $region13: #{tpu_custom_call.1} parent=11 // pred_check
          %p165 = pneg %p61
        $region14: #{tpu_custom_call.1} parent=11 // pred_check_branch
          %167 = sbr.rel (%p165) target = $region16
        $region15: #{tpu_custom_call.1} parent=11 // pred_region
          _
        $region16: #{tpu_custom_call.1} parent=11 // pred_fallthru
          _
        // Predicated region
        $region17: #{tpu_custom_call.1} parent=11 // pred_check
          %p168 = pneg %p82
        $region18: #{tpu_custom_call.1} parent=11 // pred_check_branch
          %170 = sbr.rel (%p168) target = $region20
        $region19: #{tpu_custom_call.1} parent=11 // pred_region
          _
        $region20: #{tpu_custom_call.1} parent=11 // pred_fallthru
          _
        // Predicated region
        $region21: #{tpu_custom_call.1} parent=11 // pred_check
          %p171 = pneg %p103
        $region22: #{tpu_custom_call.1} parent=11 // pred_check_branch
          %173 = sbr.rel (%p171) target = $region24
        $region23: #{tpu_custom_call.1} parent=11 // pred_region
          _
        $region24: #{tpu_custom_call.1} parent=11 // pred_fallthru
          _
        // Predicated region
        $region25: #{tpu_custom_call.1} parent=11 // pred_check
          %p174 = pneg %p124
        $region26: #{tpu_custom_call.1} parent=11 // pred_check_branch
          %176 = sbr.rel (%p174) target = $region28
        $region27: #{tpu_custom_call.1} parent=11 // pred_region
          _
        $region28: #{tpu_custom_call.1} parent=11 // pred_fallthru
          _
      $region12: #{tpu_custom_call.1} parent=5 // pred_fallthru
        _
      %p177 = scmp.lt.s32.totalorder %s14, 2
      // Predicated region
      $region29: #{tpu_custom_call.1} parent=5 // pred_check
        %p178 = pneg %p177
      $region30: #{tpu_custom_call.1} parent=5 // pred_check_branch
        %180 = sbr.rel (%p178) target = $region32
      $region31: #{tpu_custom_call.1} parent=5 // pred_region
        // Predicated region
        $region33: #{tpu_custom_call.1} parent=31 // pred_check
          %p181 = pneg %p34
        $region34: #{tpu_custom_call.1} parent=31 // pred_check_branch
          %183 = sbr.rel (%p181) target = $region36
        $region35: #{tpu_custom_call.1} parent=31 // pred_region
          %s184 = smul.u32 2, %s14
          %p185 = scmp.lt.s32.totalorder %s184, 3
          %s186 = scalar_select %p185, %s184, 3
          %s187 = smul.addr %s186, 8
          %s188 = scalar_lea.vmem %s0, %s187
          %s189 = smul.u32 2, %s14
        $region36: #{tpu_custom_call.1} parent=31 // pred_fallthru
          _
      $region32: #{tpu_custom_call.1} parent=5 // pred_fallthru
        _
      %p190 = scmp.le.s32.totalorder 1, %s14
      %p191 = scmp.lt.s32.totalorder %s14, 3
      %p192 = pnand %p190, %p191
      %p193 = pneg %p192
      // Predicated region
      $region37: #{tpu_custom_call.1} parent=5 // pred_check
        _
      $region38: #{tpu_custom_call.1} parent=5 // pred_check_branch
        %195 = sbr.rel (%p192) target = $region40
      $region39: #{tpu_custom_call.1} parent=5 // pred_region
        %s196 = ssub.s32 %s14, 1
        %s197 = smul.u32 2, %s19
        %p198 = scmp.lt.s32.totalorder %s197, 3
        %s199 = scalar_select %p198, %s197, 3
        %s200 = smul.addr %s199, 8
        %s201 = scalar_lea.vmem %s0, %s200
        %p202 = pneg %p40
        %p203 = pneg %p37
        %p204 = pneg %p61
        %p205 = pneg %p58
        %p206 = pneg %p82
        %p207 = pneg %p79
        %p208 = pneg %p103
        %p209 = pneg %p100
        %p210 = pneg %p124
        %p211 = pneg %p121
        %p212 = pneg %p150
        %p213 = pneg %p147
        %s214 = sand.u32 %s137, 1
        %s215 = scalar_lea.sflag [#allocation3], %s214
        %s216 = sand.u32 %s137, 1
        %s217 = smul.addr %s216, 16
        %s218 = scalar_lea.vmem [#allocation2], %s217
        %s219 = smul.u32 2, %s19
        %p220 = scmp.lt.s32.totalorder %s219, 3
        %s221 = scalar_select %p220, %s219, 3
        %s222 = smul.addr %s221, 8
        %s223 = scalar_lea.vmem %s0, %s222
        %s224 = smul.u32 2, %s19
        %s225 = smul.u32 2, %s19
        %v226 = vld [vmem:[%s223] sm:$0xff]
        %v227 = vld [vmem:[%s223 + $0x8] sm:$0xff]
        %v228 = vld [vmem:[%s1] sm:$0xff]
        %v229 = vld [vmem:[%s1 + $0x8] sm:$0xff]
        %v230 = vld [vmem:[%s1 + $0x10] sm:$0xff]
        %v231 = vld [vmem:[%s1 + $0x18] sm:$0xff]
        %v232 = vld [vmem:[%s1 + $0x20] sm:$0xff]
        %v233 = vld [vmem:[%s1 + $0x28] sm:$0xff]
        %v234 = vld [vmem:[%s1 + $0x30] sm:$0xff]
        %v235 = vld [vmem:[%s1 + $0x38] sm:$0xff]
        %v236 = vld [vmem:[%s1 + $0x40] sm:$0xff]
        %v237 = vld [vmem:[%s1 + $0x48] sm:$0xff]
        %v238 = vld [vmem:[%s1 + $0x50] sm:$0xff]
        %v239 = vld [vmem:[%s1 + $0x58] sm:$0xff]
        %v240 = vld [vmem:[%s1 + $0x60] sm:$0xff]
        %v241 = vld [vmem:[%s1 + $0x68] sm:$0xff]
        %v242 = vld [vmem:[%s1 + $0x70] sm:$0xff]
        %v243 = vld [vmem:[%s1 + $0x78] sm:$0xff]
        %v244 = vld [vmem:[%s1 + $0x80] sm:$0xff]
        %v245 = vld [vmem:[%s1 + $0x88] sm:$0xff]
        %v246 = vld [vmem:[%s1 + $0x90] sm:$0xff]
        %v247 = vld [vmem:[%s1 + $0x98] sm:$0xff]
        %v248 = vld [vmem:[%s1 + $0xa0] sm:$0xff]
        %v249 = vld [vmem:[%s1 + $0xa8] sm:$0xff]
        %v250 = vld [vmem:[%s1 + $0xb0] sm:$0xff]
        %v251 = vld [vmem:[%s1 + $0xb8] sm:$0xff]
        %v252 = vld [vmem:[%s1 + $0xc0] sm:$0xff]
        %v253 = vld [vmem:[%s1 + $0xc8] sm:$0xff]
        %v254 = vld [vmem:[%s1 + $0xd0] sm:$0xff]
        %v255 = vld [vmem:[%s1 + $0xd8] sm:$0xff]
        %v256 = vld [vmem:[%s1 + $0xe0] sm:$0xff]
        %v257 = vld [vmem:[%s1 + $0xe8] sm:$0xff]
        %v258 = vld [vmem:[%s1 + $0xf0] sm:$0xff]
        %v259 = vld [vmem:[%s1 + $0xf8] sm:$0xff]
        %v260 = vld [vmem:[%s2] sm:$0x3]
        %v262 = vlaneseq
        %v263 = vshrl.u32 %v262, 7
        %v264 = vsub.s32 0, %v263
        %v265 = vrot.slane %v260, %v264
        %v266 = vlaneseq
        %v267 = vshrl.u32 %v266, 7
        %v268 = vsub.s32 1, %v267
        %v269 = vrot.slane %v260, %v268
        %272 = vmatprep.subr.mxu0 %v229
        %273 = vmatpush1.msra.mxu0 %v228
        %274 = vmatprep.subr.mxu0 %v231
        %275 = vmatpush1.msra.mxu0 %v230
        %276 = vmatprep.subr.mxu0 %v233
        %277 = vmatpush1.msra.mxu0 %v232
        %278 = vmatprep.subr.mxu0 %v235
        %279 = vmatpush1.msra.mxu0 %v234
        %280 = vmatprep.subr.mxu0 %v237
        %281 = vmatpush1.msra.mxu0 %v236
        %282 = vmatprep.subr.mxu0 %v239
        %283 = vmatpush1.msra.mxu0 %v238
        %284 = vmatprep.subr.mxu0 %v241
        %285 = vmatpush1.msra.mxu0 %v240
        %286 = vmatprep.subr.mxu0 %v243
        %287 = vmatpush1.msra.mxu0 %v242
        %288 = vmatprep.subr.mxu0 %v245
        %289 = vmatpush1.msra.mxu0 %v244
        %290 = vmatprep.subr.mxu0 %v247
        %291 = vmatpush1.msra.mxu0 %v246
        %292 = vmatprep.subr.mxu0 %v249
        %293 = vmatpush1.msra.mxu0 %v248
        %294 = vmatprep.subr.mxu0 %v251
        %295 = vmatpush1.msra.mxu0 %v250
        %296 = vmatprep.subr.mxu0 %v253
        %297 = vmatpush1.msra.mxu0 %v252
        %298 = vmatprep.subr.mxu0 %v255
        %299 = vmatpush1.msra.mxu0 %v254
        %300 = vmatprep.subr.mxu0 %v257
        %301 = vmatpush1.msra.mxu0 %v256
        %302 = vmatprep.subr.mxu0 %v259
        %303 = vmatpush1.msra.mxu0 %v258
        %304 = vmatprep.subr.mxu0 0.0
        %305 = vmatpush1.msra.mxu0 0.0
        %306 = vmatprep.subr.mxu0 0.0
        %307 = vmatpush1.msra.mxu0 0.0
        %308 = vmatprep.subr.mxu0 0.0
        %309 = vmatpush1.msra.mxu0 0.0
        %310 = vmatprep.subr.mxu0 0.0
        %311 = vmatpush1.msra.mxu0 0.0
        %312 = vmatprep.subr.mxu0 0.0
        %313 = vmatpush1.msra.mxu0 0.0
        %314 = vmatprep.subr.mxu0 0.0
        %315 = vmatpush1.msra.mxu0 0.0
        %316 = vmatprep.subr.mxu0 0.0
        %317 = vmatpush1.msra.mxu0 0.0
        %318 = vmatprep.subr.mxu0 0.0
        %319 = vmatpush1.msra.mxu0 0.0
        %320 = vmatprep.subr.mxu0 0.0
        %321 = vmatpush1.msra.mxu0 0.0
        %322 = vmatprep.subr.mxu0 0.0
        %323 = vmatpush1.msra.mxu0 0.0
        %324 = vmatprep.subr.mxu0 0.0
        %325 = vmatpush1.msra.mxu0 0.0
        %326 = vmatprep.subr.mxu0 0.0
        %327 = vmatpush1.msra.mxu0 0.0
        %328 = vmatprep.subr.mxu0 0.0
        %329 = vmatpush1.msra.mxu0 0.0
        %330 = vmatprep.subr.mxu0 0.0
        %331 = vmatpush1.msra.mxu0 0.0
        %332 = vmatprep.subr.mxu0 0.0
        %333 = vmatpush1.msra.mxu0 0.0
        %334 = vmatprep.subr.mxu0 0.0
        %335 = vmatpush1.msra.mxu0 0.0
        %336 = vmatprep.mubr.f32.mxu0 0.0
        %337 = vmatmul.mubr.f32.gmra.mrb[0].mxu0 %v226
        %v338 = vpop.f32.mrb[0].mxu0
        %v339 = vadd.f32 %v265, %v338
        %v340 = vpop.f32.mrb[0].mxu0
        %v341 = vadd.f32 %v269, %v340
        %342 = vmatprep.mubr.f32.mxu0 0.0
        %343 = vmatmul.mubr.f32.gmra.mrb[0].mxu0 %v227
        %v344 = vpop.f32.mrb[0].mxu0
        %v345 = vadd.f32 %v265, %v344
        %v346 = vpop.f32.mrb[0].mxu0
        %v347 = vadd.f32 %v269, %v346
        %348 = vdwg.mxu0
        %v349 = vtanh.pop %v339
        %v350 = vtanh.pop %v341
        %v351 = vtanh.pop %v345
        %v352 = vtanh.pop %v347
        %v353 = vld [vmem:[%s3] sm:$0xff]
        %v354 = vld [vmem:[%s3 + $0x8] sm:$0xff]
        %v355 = vld [vmem:[%s3 + $0x10] sm:$0xff]
        %v356 = vld [vmem:[%s3 + $0x18] sm:$0xff]
        %v357 = vld [vmem:[%s3 + $0x20] sm:$0xff]
        %v358 = vld [vmem:[%s3 + $0x28] sm:$0xff]
        %v359 = vld [vmem:[%s3 + $0x30] sm:$0xff]
        %v360 = vld [vmem:[%s3 + $0x38] sm:$0xff]
        %v361 = vld [vmem:[%s3 + $0x40] sm:$0xff]
        %v362 = vld [vmem:[%s3 + $0x48] sm:$0xff]
        %v363 = vld [vmem:[%s3 + $0x50] sm:$0xff]
        %v364 = vld [vmem:[%s3 + $0x58] sm:$0xff]
        %v365 = vld [vmem:[%s3 + $0x60] sm:$0xff]
        %v366 = vld [vmem:[%s3 + $0x68] sm:$0xff]
        %v367 = vld [vmem:[%s3 + $0x70] sm:$0xff]
        %v368 = vld [vmem:[%s3 + $0x78] sm:$0xff]
        %v369 = vld [vmem:[%s3 + $0x80] sm:$0xff]
        %v370 = vld [vmem:[%s3 + $0x88] sm:$0xff]
        %v371 = vld [vmem:[%s3 + $0x90] sm:$0xff]
        %v372 = vld [vmem:[%s3 + $0x98] sm:$0xff]
        %v373 = vld [vmem:[%s3 + $0xa0] sm:$0xff]
        %v374 = vld [vmem:[%s3 + $0xa8] sm:$0xff]
        %v375 = vld [vmem:[%s3 + $0xb0] sm:$0xff]
        %v376 = vld [vmem:[%s3 + $0xb8] sm:$0xff]
        %v377 = vld [vmem:[%s3 + $0xc0] sm:$0xff]
        %v378 = vld [vmem:[%s3 + $0xc8] sm:$0xff]
        %v379 = vld [vmem:[%s3 + $0xd0] sm:$0xff]
        %v380 = vld [vmem:[%s3 + $0xd8] sm:$0xff]
        %v381 = vld [vmem:[%s3 + $0xe0] sm:$0xff]
        %v382 = vld [vmem:[%s3 + $0xe8] sm:$0xff]
        %v383 = vld [vmem:[%s3 + $0xf0] sm:$0xff]
        %v384 = vld [vmem:[%s3 + $0xf8] sm:$0xff]
        %v385 = vld [vmem:[%s4] sm:$0x1]
        %v387 = vlaneseq
        %v388 = vshrl.u32 %v387, 7
        %v389 = vsub.s32 0, %v388
        %v390 = vrot.slane %v385, %v389
        %392 = vmatprep.subr.mxu0 0.0
        %393 = vmatpush1.msra.mxu0 %v353
        %394 = vmatprep.subr.mxu0 0.0
        %395 = vmatpush1.msra.mxu0 %v354
        %396 = vmatprep.subr.mxu0 0.0
        %397 = vmatpush1.msra.mxu0 %v355
        %398 = vmatprep.subr.mxu0 0.0
        %399 = vmatpush1.msra.mxu0 %v356
        %400 = vmatprep.subr.mxu0 0.0
        %401 = vmatpush1.msra.mxu0 %v357
        %402 = vmatprep.subr.mxu0 0.0
        %403 = vmatpush1.msra.mxu0 %v358
        %404 = vmatprep.subr.mxu0 0.0
        %405 = vmatpush1.msra.mxu0 %v359
        %406 = vmatprep.subr.mxu0 0.0
        %407 = vmatpush1.msra.mxu0 %v360
        %408 = vmatprep.subr.mxu0 0.0
        %409 = vmatpush1.msra.mxu0 %v361
        %410 = vmatprep.subr.mxu0 0.0
        %411 = vmatpush1.msra.mxu0 %v362
        %412 = vmatprep.subr.mxu0 0.0
        %413 = vmatpush1.msra.mxu0 %v363
        %414 = vmatprep.subr.mxu0 0.0
        %415 = vmatpush1.msra.mxu0 %v364
        %416 = vmatprep.subr.mxu0 0.0
        %417 = vmatpush1.msra.mxu0 %v365
        %418 = vmatprep.subr.mxu0 0.0
        %419 = vmatpush1.msra.mxu0 %v366
        %420 = vmatprep.subr.mxu0 0.0
        %421 = vmatpush1.msra.mxu0 %v367
        %422 = vmatprep.subr.mxu0 0.0
        %423 = vmatpush1.msra.mxu0 %v368
        %424 = vmatprep.subr.mxu0 0.0
        %425 = vmatpush1.msra.mxu0 %v369
        %426 = vmatprep.subr.mxu0 0.0
        %427 = vmatpush1.msra.mxu0 %v370
        %428 = vmatprep.subr.mxu0 0.0
        %429 = vmatpush1.msra.mxu0 %v371
        %430 = vmatprep.subr.mxu0 0.0
        %431 = vmatpush1.msra.mxu0 %v372
        %432 = vmatprep.subr.mxu0 0.0
        %433 = vmatpush1.msra.mxu0 %v373
        %434 = vmatprep.subr.mxu0 0.0
        %435 = vmatpush1.msra.mxu0 %v374
        %436 = vmatprep.subr.mxu0 0.0
        %437 = vmatpush1.msra.mxu0 %v375
        %438 = vmatprep.subr.mxu0 0.0
        %439 = vmatpush1.msra.mxu0 %v376
        %440 = vmatprep.subr.mxu0 0.0
        %441 = vmatpush1.msra.mxu0 %v377
        %442 = vmatprep.subr.mxu0 0.0
        %443 = vmatpush1.msra.mxu0 %v378
        %444 = vmatprep.subr.mxu0 0.0
        %445 = vmatpush1.msra.mxu0 %v379
        %446 = vmatprep.subr.mxu0 0.0
        %447 = vmatpush1.msra.mxu0 %v380
        %448 = vmatprep.subr.mxu0 0.0
        %449 = vmatpush1.msra.mxu0 %v381
        %450 = vmatprep.subr.mxu0 0.0
        %451 = vmatpush1.msra.mxu0 %v382
        %452 = vmatprep.subr.mxu0 0.0
        %453 = vmatpush1.msra.mxu0 %v383
        %454 = vmatprep.subr.mxu0 0.0
        %455 = vmatpush1.msra.mxu0 %v384
        %456 = vmatprep.mubr.f32.mxu0 %v350
        %457 = vmatmul.mubr.f32.gmra.mrb[0].mxu0 %v349
        %v458 = vpop.f32.mrb[0].mxu0
        %v459 = vadd.f32 %v390, %v458
        %v460 = vpop.f32.mrb[0].mxu0
        %461 = vmatprep.mubr.f32.mxu0 %v352
        %462 = vmatmul.mubr.f32.gmra.mrb[0].mxu0 %v351
        %v463 = vpop.f32.mrb[0].mxu0
        %v464 = vadd.f32 %v390, %v463
        %v465 = vpop.f32.mrb[0].mxu0
        %466 = vdwg.mxu0
        %vm467 = vcmask 523264
        %468 = vst.msk [vmem:[%s218] sm:$0xff] %vm467, %v459
        %469 = vst.msk [vmem:[%s218 + $0x8] sm:$0xff] %vm467, %v464
        %s470 = sand.u32 %s137, 1
        %s471 = scalar_lea.sflag [#allocation3], %s470
        %s472 = sand.u32 %s137, 1
        %s473 = smul.addr %s472, 16
        %s474 = scalar_lea.vmem [#allocation2], %s473
        // Predicated region
        $region41: #{tpu_custom_call.1} parent=39 // pred_check
          %p475 = pneg %p147
        $region42: #{tpu_custom_call.1} parent=39 // pred_check_branch
          %477 = sbr.rel (%p475) target = $region44
        $region43: #{tpu_custom_call.1} parent=39 // pred_region
          %s478 = smul.u32 2, %s19
          %s480 = ssub.s32 256, 256
          %481 = vsyncadd %s471, %s480
          %s482 = smul.addr %s478, 128
          %s483 = scalar_lea.hbm %s5, %s482
          %s484 = sshll.u32 %s474, 4
          %s485 = int_to_ptr.vmem [resolvable:$true] %s484
          %490 = dma.vmem_to_hbm [thread:$0]  %s485, 256, %s483, %s471, 128, 128, 8
        $region44: #{tpu_custom_call.1} parent=39 // pred_fallthru
          _
      $region40: #{tpu_custom_call.1} parent=5 // pred_fallthru
        _
      %p491 = scmp.le.s32.totalorder 2, %s14
      // Predicated region
      $region45: #{tpu_custom_call.1} parent=5 // pred_check
        %p492 = pneg %p491
      $region46: #{tpu_custom_call.1} parent=5 // pred_check_branch
        %494 = sbr.rel (%p492) target = $region48
      $region47: #{tpu_custom_call.1} parent=5 // pred_region
        %s495 = ssub.s32 %s14, 2
        // Predicated region
        $region49: #{tpu_custom_call.1} parent=47 // pred_check
          %p496 = pneg %p153
        $region50: #{tpu_custom_call.1} parent=47 // pred_check_branch
          %498 = sbr.rel (%p496) target = $region52
        $region51: #{tpu_custom_call.1} parent=47 // pred_region
          %s499 = sand.u32 %s138, 1
          %s500 = scalar_lea.sflag [#allocation3], %s499
          %s501 = sand.u32 %s138, 1
          %s502 = smul.addr %s501, 16
          %s503 = scalar_lea.vmem [#allocation2], %s502
          %504 = dma.done %s500, 256
        $region52: #{tpu_custom_call.1} parent=47 // pred_fallthru
          _
      $region48: #{tpu_custom_call.1} parent=5 // pred_fallthru
        _
    $region6: #{tpu_custom_call.1} parent=1 // loop_footer
      %s18 = sadd.s32 1, %s14
    $region7: #{tpu_custom_call.1} parent=1 // loop_footer_branch
      %13 = sbr.rel target = $region3
    $region8: #{tpu_custom_call.1} parent=1 // loop_exit
      _
    %505 = vsyncpa [#allocation3], 1
    %s506 = scalar_lea.sflag [#allocation3], 1
    %507 = vsyncpa %s506, 1

</llo_original>
